<compile_context>
chip_gen: v5e
topology: v5e:2x2
jax: 0.10.0
libtpu: 0.0.40
codegen_flags: <defaults>
</compile_context>

<pallas_src>
import jax
import jax.numpy as jnp
from jax.experimental import pallas as pl
from jax.experimental.pallas import tpu as pltpu

EPS = 1e-5  # RevIN default eps


def _rlinear_kernel(x_ref, w_ref, b_ref, wsum_ref, aw_ref, ab_ref, o_ref):
    # x_ref   : (BT, L, CT)  batch tile x full seq_len x channel tile (channels on lanes)
    # w_ref   : (P, L)       linear weight, resident, already in matmul dtype
    # b_ref   : (P, 1)       linear bias (f32), resident
    # wsum_ref: (P, 1)       rowsum(W) (f32), resident
    # aw_ref  : (1, CT)      RevIN affine weight (per channel)
    # ab_ref  : (1, CT)      RevIN affine bias  (per channel)
    # o_ref   : (BT, P, CT)
    x = x_ref[...].astype(jnp.float32)                       # (BT, L, CT)

    # --- RevIN norm: stats over seq_len (axis 1), unbiased=False ---
    mean = jnp.mean(x, axis=1, keepdims=True)                # (BT, 1, CT)
    xc = x - mean
    var = jnp.mean(xc * xc, axis=1, keepdims=True)           # (BT, 1, CT)
    stdev = jnp.sqrt(var + EPS)                              # (BT, 1, CT)

    aw = aw_ref[...].astype(jnp.float32)                     # (1, CT)
    ab = ab_ref[...].astype(jnp.float32)                     # (1, CT)

    # Normalize WITHOUT the "+ ab": its image through the linear layer is added
    # back below as rowsum(W) ⊗ ab (a P·CT term instead of an L·CT add).
    scale = aw / stdev                                       # (BT, 1, CT), exact
    xh = xc * scale                                          # (BT, L, CT): one mul/elem

    # --- dropout: identity (inference) ---

    # --- Linear(seq_len -> pred_len) on the MXU: (P,L) @ (L,CT) per batch ---
    mm_dtype = w_ref.dtype
    prec = jax.lax.Precision.HIGHEST if mm_dtype == jnp.float32 else None
    m = jnp.einsum("pl,blc->bpc", w_ref[...], xh.astype(mm_dtype),
                   preferred_element_type=jnp.float32,
                   precision=prec)                           # (BT, P, CT)

    # Batch-independent additive term: rowsum(W)*ab + bias  (P, CT)
    addc = wsum_ref[...].astype(jnp.float32) * ab + b_ref[...].astype(jnp.float32)

    # --- RevIN denorm fused: out = (m + addc) * dscale + (mean - ab * dscale) ---
    dscale = stdev / (aw + EPS * EPS)                        # (BT, 1, CT), exact
    off = mean - ab * dscale                                 # (BT, 1, CT)
    out = (m + addc[None]) * dscale + off                    # (BT, P, CT)

    o_ref[...] = out.astype(o_ref.dtype)


def _pick_channel_tile(Cp, B):
    """Largest lane-aligned tile dividing Cp that still yields >= 8 grid steps
    (feeds both v7x TensorCores and leaves room for double-buffer overlap)."""
    cands = [c for c in (512, 256, 128) if Cp % c == 0]
    if not cands:
        return Cp  # unreachable after channel padding; safe full-extent fallback
    for c in cands:
        if B * (Cp // c) >= 8:
            return c
    return cands[-1]


def _pick_batch_tile(B, L, CT, itemsize, n_ct):
    """Block several batches per grid step when per-step slabs would otherwise be
    tiny (amortize ~0.35 us/step overhead), but keep >= 8 grid steps when possible."""
    target = 512 * 1024  # a few hundred KB per x slab
    bt = 1
    for cand in range(2, B + 1):
        if B % cand:
            continue
        if cand * L * CT * itemsize > target:
            break
        if (B // cand) * n_ct < 8:
            break
        bt = cand
    return bt


def _vmem_limit_bytes(BT, L, P, CT, x_itemsize, w_itemsize):
    """Rough VMEM footprint: double-buffered x/out slabs, resident weight, and a
    generous allowance for the f32 normalization temporaries."""
    est = (2 * BT * L * CT * x_itemsize          # x (2 pipeline buffers)
           + 2 * BT * P * CT * x_itemsize        # out (2 pipeline buffers)
           + 2 * P * L * w_itemsize              # weight (default double-buffered)
           + 4 * BT * L * CT * 4                 # f32 temps (x, xc, xh, ...)
           + 2 * BT * P * CT * 4                 # f32 result temps
           + (1 << 20))                          # small params + slack
    if est <= 16 * 1024 * 1024:                  # fits v5e's 16 MiB default scope
        return None
    return int(min(64 * 1024 * 1024, est))       # never past v7x physical VMEM


def rlinear_forward(x, weight, bias, affine_weight, affine_bias, *, mxu_dtype=None):
    """x: (B, L, C); weight: (P, L); bias: (P,); affine_weight/bias: (C,).
    Returns (B, P, C), written directly in its final layout.

    mxu_dtype: optional dtype for the MXU matmul (e.g. jnp.bfloat16 on v6e/v7x for
    the fast native path); default = x.dtype (exact for f32 inputs)."""
    B, L, C = x.shape
    P = weight.shape[0]

    # Pad channels to a multiple of 128: lane-dense stores are the single biggest
    # measured TPU lever; padded channels are sliced off at the end.
    LANE = 128
    Cp = C if C % LANE == 0 else ((C + LANE - 1) // LANE) * LANE
    if Cp != C:
        pad = Cp - C
        x = jnp.pad(x, ((0, 0), (0, 0), (0, pad)))
        affine_weight = jnp.pad(affine_weight, (0, pad), constant_values=1.0)
        affine_bias = jnp.pad(affine_bias, (0, pad))

    x_itemsize = jnp.dtype(x.dtype).itemsize
    CT = _pick_channel_tile(Cp, B)
    n_ct = Cp // CT
    BT = _pick_batch_tile(B, L, CT, x_itemsize, n_ct)
    grid = (B // BT, n_ct)

    # Hoist casts / reshapes out of the kernel (they would otherwise re-run every step).
    mm_dtype = x.dtype if mxu_dtype is None else mxu_dtype
    w = weight.astype(mm_dtype)                                       # (P, L)
    b2 = bias.reshape(P, 1).astype(jnp.float32)                       # (P, 1)
    wsum = jnp.sum(weight.astype(jnp.float32), axis=1, keepdims=True)  # (P, 1)
    aw2 = affine_weight.reshape(1, Cp)
    ab2 = affine_bias.reshape(1, Cp)

    vmem_limit = _vmem_limit_bytes(BT, L, P, CT, x_itemsize,
                                   jnp.dtype(mm_dtype).itemsize)

    out = pl.pallas_call(
        _rlinear_kernel,
        out_shape=jax.ShapeDtypeStruct((B, P, Cp), x.dtype),
        grid=grid,
        in_specs=[
            pl.BlockSpec((BT, L, CT), lambda b, c: (b, 0, c)),   # x slab
            # Constant-index blocks below stay resident across the grid.
            pl.BlockSpec((P, L), lambda b, c: (0, 0)),           # weight (matmul dtype)
            pl.BlockSpec((P, 1), lambda b, c: (0, 0)),           # bias (f32)
            pl.BlockSpec((P, 1), lambda b, c: (0, 0)),           # rowsum(W) (f32)
            pl.BlockSpec((1, CT), lambda b, c: (0, c)),          # affine weight
            pl.BlockSpec((1, CT), lambda b, c: (0, c)),          # affine bias
        ],
        out_specs=pl.BlockSpec((BT, P, CT), lambda b, c: (b, 0, c)),
        compiler_params=pltpu.CompilerParams(
            dimension_semantics=("parallel", "parallel"),
            vmem_limit_bytes=vmem_limit),
    )(x, w, b2, wsum, aw2, ab2)

    if Cp != C:
        out = out[:, :, :C]
    return out  # (B, P, C)


def reference_forward(x, weight, bias, affine_weight, affine_bias):
    """Pure-JAX reference mirroring the PyTorch RLinear forward (eval mode)."""
    mean = jnp.mean(x, axis=1, keepdims=True)
    stdev = jnp.sqrt(jnp.var(x, axis=1, keepdims=True, ddof=0) + EPS)
    xn = (x - mean) / stdev
    xn = xn * affine_weight + affine_bias                   # (B, L, C)
    xt = jnp.transpose(xn, (0, 2, 1))                       # (B, C, L)
    pred = jnp.einsum("bcl,pl->bcp", xt, weight,
                      precision=jax.lax.Precision.HIGHEST) + bias    # (B, C, P)
    pred = jnp.transpose(pred, (0, 2, 1))                   # (B, P, C)
    pred = (pred - affine_bias) / (affine_weight + EPS * EPS)
    pred = pred * stdev + mean
    return pred


if __name__ == "__main__":
    # configs: seq_len=16, pred_len=8, channel=4, batch=2,
    #          individual=False, rev=True, drop (identity at inference)
    # Note: at this toy size the problem is pure launch overhead; the kernel is
    # structured for real LTSF sizes (C padded to >=128 on the lane axis).
    B, L, C, P = 2, 16, 4, 8

    key = jax.random.PRNGKey(0)
    kx, kw, kb, kaw, kab = jax.random.split(key, 5)

    x = jax.random.normal(kx, (B, L, C), dtype=jnp.float32)

    # nn.Linear(seq_len, pred_len): weight (P, L), bias (P,)
    bound = 1.0 / jnp.sqrt(jnp.float32(L))
    weight = jax.random.uniform(kw, (P, L), minval=-bound, maxval=bound,
                                dtype=jnp.float32)
    bias = jax.random.uniform(kb, (P,), minval=-bound, maxval=bound,
                              dtype=jnp.float32)

    # RevIN affine params: non-trivial values so the affine fold paths are exercised.
    affine_weight = 1.0 + 0.1 * jax.random.normal(kaw, (C,), dtype=jnp.float32)
    affine_bias = 0.05 * jax.random.normal(kab, (C,), dtype=jnp.float32)

    out = rlinear_forward(x, weight, bias, affine_weight, affine_bias)
    out = jax.block_until_ready(out)

    ref = reference_forward(x, weight, bias, affine_weight, affine_bias)
    assert out.shape == (B, P, C), out.shape
    max_err = float(jnp.max(jnp.abs(out - ref)))
    assert jnp.allclose(out, ref, atol=1e-4, rtol=1e-4), max_err

    print("KERNEL_OK")
</pallas_src>

<mosaic_0001>
module attributes {stable_mosaic.version = 11 : i64} {
  func.func @_rlinear_kernel(%arg0: i32, %arg1: i32, %arg2: memref<1x16x128xf32, #tpu.memory_space<vmem>>, %arg3: memref<8x16xf32, #tpu.memory_space<vmem>>, %arg4: memref<8x1xf32, #tpu.memory_space<vmem>>, %arg5: memref<8x1xf32, #tpu.memory_space<vmem>>, %arg6: memref<1x128xf32, #tpu.memory_space<vmem>>, %arg7: memref<1x128xf32, #tpu.memory_space<vmem>>, %arg8: memref<1x8x128xf32, #tpu.memory_space<vmem>>) attributes {dimension_semantics = [#tpu.dimension_semantics<parallel>, #tpu.dimension_semantics<parallel>], iteration_bounds = array<i64: 2, 1>, scalar_prefetch = 0 : i64, scratch_operands = 0 : i64, tpu.core_type = #tpu.core_type<tc>, window_params = [{transform_indices = @transform_0, window_bounds = array<i64: 1, 16, 128>}, {pipeline_mode = #tpu.pipeline_mode<synchronous>, transform_indices = @transform_1, window_bounds = array<i64: 8, 16>}, {pipeline_mode = #tpu.pipeline_mode<synchronous>, transform_indices = @transform_2, window_bounds = array<i64: 8, 1>}, {pipeline_mode = #tpu.pipeline_mode<synchronous>, transform_indices = @transform_3, window_bounds = array<i64: 8, 1>}, {transform_indices = @transform_4, window_bounds = array<i64: 1, 128>}, {transform_indices = @transform_5, window_bounds = array<i64: 1, 128>}, {transform_indices = @transform_6, window_bounds = array<i64: 1, 8, 128>}]} {
    %c0 = arith.constant 0 : index
    %c0_0 = arith.constant 0 : index
    %c0_1 = arith.constant 0 : index
    %0 = vector.load %arg2[%c0, %c0_0, %c0_1] : memref<1x16x128xf32, #tpu.memory_space<vmem>>, vector<1x16x128xf32>
    %cst = arith.constant dense<0.000000e+00> : vector<1x128xf32>
    %1 = vector.multi_reduction <add>, %0, %cst [1] : vector<1x16x128xf32> to vector<1x128xf32>
    %2 = vector.shape_cast %1 : vector<1x128xf32> to vector<1x1x128xf32>
    %cst_2 = arith.constant 1.600000e+01 : f32
    %3 = vector.broadcast %cst_2 : f32 to vector<1x1x128xf32>
    %4 = arith.divf %2, %3 : vector<1x1x128xf32>
    %5 = vector.broadcast %4 : vector<1x1x128xf32> to vector<1x16x128xf32>
    %6 = arith.subf %0, %5 : vector<1x16x128xf32>
    %7 = arith.mulf %6, %6 : vector<1x16x128xf32>
    %cst_3 = arith.constant dense<0.000000e+00> : vector<1x128xf32>
    %8 = vector.multi_reduction <add>, %7, %cst_3 [1] : vector<1x16x128xf32> to vector<1x128xf32>
    %9 = vector.shape_cast %8 : vector<1x128xf32> to vector<1x1x128xf32>
    %cst_4 = arith.constant 1.600000e+01 : f32
    %10 = vector.broadcast %cst_4 : f32 to vector<1x1x128xf32>
    %11 = arith.divf %9, %10 : vector<1x1x128xf32>
    %cst_5 = arith.constant 9.99999974E-6 : f32
    %12 = vector.broadcast %cst_5 : f32 to vector<1x1x128xf32>
    %13 = arith.addf %11, %12 : vector<1x1x128xf32>
    %14 = math.sqrt %13 : vector<1x1x128xf32>
    %c0_6 = arith.constant 0 : index
    %c0_7 = arith.constant 0 : index
    %15 = vector.load %arg6[%c0_6, %c0_7] : memref<1x128xf32, #tpu.memory_space<vmem>>, vector<1x128xf32>
    %c0_8 = arith.constant 0 : index
    %c0_9 = arith.constant 0 : index
    %16 = vector.load %arg7[%c0_8, %c0_9] : memref<1x128xf32, #tpu.memory_space<vmem>>, vector<1x128xf32>
    %17 = vector.shape_cast %15 : vector<1x128xf32> to vector<1x1x128xf32>
    %18 = arith.divf %17, %14 : vector<1x1x128xf32>
    %19 = vector.broadcast %18 : vector<1x1x128xf32> to vector<1x16x128xf32>
    %20 = arith.mulf %6, %19 : vector<1x16x128xf32>
    %c0_10 = arith.constant 0 : index
    %c0_11 = arith.constant 0 : index
    %21 = vector.load %arg3[%c0_10, %c0_11] : memref<8x16xf32, #tpu.memory_space<vmem>>, vector<8x16xf32>
    "tpu.trace_start"() <{level = 10 : i32, message = "pl,blc->bpc"}> : () -> ()
    %cst_12 = arith.constant dense<0.000000e+00> : vector<1x128x8xf32>
    %22 = tpu.matmul %20, %21, %cst_12 {dimension_numbers = #tpu.dot_dimension_numbers<[1], [1], [0, 2], [0], [0, 0, 0, 2, 1, 0], [], []>, precision = #tpu.contract_precision<fp32>} : vector<1x16x128xf32>, vector<8x16xf32>, vector<1x128x8xf32> -> vector<1x128x8xf32>
    %23 = tpu.transpose %22, [0, 2, 1] : vector<1x128x8xf32> -> vector<1x8x128xf32>
    "tpu.trace_stop"() : () -> ()
    %c0_13 = arith.constant 0 : index
    %c0_14 = arith.constant 0 : index
    %24 = vector.load %arg5[%c0_13, %c0_14] : memref<8x1xf32, #tpu.memory_space<vmem>>, vector<8x1xf32>
    %25 = vector.broadcast %24 : vector<8x1xf32> to vector<8x128xf32>
    %26 = vector.broadcast %16 : vector<1x128xf32> to vector<8x128xf32>
    %27 = arith.mulf %25, %26 : vector<8x128xf32>
    %c0_15 = arith.constant 0 : index
    %c0_16 = arith.constant 0 : index
    %28 = vector.load %arg4[%c0_15, %c0_16] : memref<8x1xf32, #tpu.memory_space<vmem>>, vector<8x1xf32>
    %29 = vector.broadcast %28 : vector<8x1xf32> to vector<8x128xf32>
    %30 = arith.addf %27, %29 : vector<8x128xf32>
    %cst_17 = arith.constant 1.000000e-10 : f32
    %31 = vector.broadcast %cst_17 : f32 to vector<1x128xf32>
    %32 = arith.addf %15, %31 : vector<1x128xf32>
    %33 = vector.shape_cast %32 : vector<1x128xf32> to vector<1x1x128xf32>
    %34 = arith.divf %14, %33 : vector<1x1x128xf32>
    %35 = vector.shape_cast %16 : vector<1x128xf32> to vector<1x1x128xf32>
    %36 = arith.mulf %35, %34 : vector<1x1x128xf32>
    %37 = arith.subf %4, %36 : vector<1x1x128xf32>
    %38 = vector.shape_cast %30 : vector<8x128xf32> to vector<1x8x128xf32>
    %39 = arith.addf %23, %38 : vector<1x8x128xf32>
    %40 = vector.broadcast %34 : vector<1x1x128xf32> to vector<1x8x128xf32>
    %41 = arith.mulf %39, %40 : vector<1x8x128xf32>
    %42 = vector.broadcast %37 : vector<1x1x128xf32> to vector<1x8x128xf32>
    %43 = arith.addf %41, %42 : vector<1x8x128xf32>
    %c0_18 = arith.constant 0 : index
    %c0_19 = arith.constant 0 : index
    %c0_20 = arith.constant 0 : index
    %44 = vector.load %arg8[%c0_18, %c0_19, %c0_20] : memref<1x8x128xf32, #tpu.memory_space<vmem>>, vector<1x8x128xf32>
    tpu.vector_store %arg8[%c0_18, %c0_19, %c0_20], %43 {strides = array<i32>} : memref<1x8x128xf32, #tpu.memory_space<vmem>>, vector<1x8x128xf32>,
    return
  }
  func.func @transform_0(%arg0: i32, %arg1: i32) -> (i32, i32, i32) {
    %c0_i32 = arith.constant 0 : i32
    %c0_i32_0 = arith.constant 0 : i32
    return %arg0, %c0_i32, %arg1 : i32, i32, i32
  }
  func.func @transform_1(%arg0: i32, %arg1: i32) -> (i32, i32) {
    %c0_i32 = arith.constant 0 : i32
    %c0_i32_0 = arith.constant 0 : i32
    %c0_i32_1 = arith.constant 0 : i32
    return %c0_i32, %c0_i32_0 : i32, i32
  }
  func.func @transform_2(%arg0: i32, %arg1: i32) -> (i32, i32) {
    %c0_i32 = arith.constant 0 : i32
    %c0_i32_0 = arith.constant 0 : i32
    %c0_i32_1 = arith.constant 0 : i32
    return %c0_i32, %c0_i32_0 : i32, i32
  }
  func.func @transform_3(%arg0: i32, %arg1: i32) -> (i32, i32) {
    %c0_i32 = arith.constant 0 : i32
    %c0_i32_0 = arith.constant 0 : i32
    %c0_i32_1 = arith.constant 0 : i32
    return %c0_i32, %c0_i32_0 : i32, i32
  }
  func.func @transform_4(%arg0: i32, %arg1: i32) -> (i32, i32) {
    %c0_i32 = arith.constant 0 : i32
    %c0_i32_0 = arith.constant 0 : i32
    return %c0_i32, %arg1 : i32, i32
  }
  func.func @transform_5(%arg0: i32, %arg1: i32) -> (i32, i32) {
    %c0_i32 = arith.constant 0 : i32
    %c0_i32_0 = arith.constant 0 : i32
    return %c0_i32, %arg1 : i32, i32
  }
  func.func @transform_6(%arg0: i32, %arg1: i32) -> (i32, i32, i32) {
    %c0_i32 = arith.constant 0 : i32
    %c0_i32_0 = arith.constant 0 : i32
    return %arg0, %c0_i32, %arg1 : i32, i32, i32
  }
}

</mosaic_0001>

<llo_original>
// kernel: tpu_custom_call.1
$region0: #{tpu_custom_call.1}
  #allocation0 [shape = 'u32[]', space=smem, size = 0x4, offset = 0x4, fixed_abs, tag = 'smem constant byte address 0x4 - core index']
  #allocation1 [shape = 'u32[72,128]{1,0:T(1,128)}', space=vmem, size = 0x9000, scoped, tag = 'internal scratch']
  %s0 = inlined_call_operand.hbm [shape: f32[2,16,128], index: 0, kind: input, shape index: {}]
  %s1 = inlined_call_operand.vmem [shape: f32[8,16], index: 1, kind: input, shape index: {}]
  %s2 = inlined_call_operand.vmem [shape: f32[8,1], index: 2, kind: input, shape index: {}]
  %s3 = inlined_call_operand.vmem [shape: f32[8,1], index: 3, kind: input, shape index: {}]
  %s4 = inlined_call_operand.vmem [shape: f32[1,128], index: 4, kind: input, shape index: {}]
  %s5 = inlined_call_operand.vmem [shape: f32[1,128], index: 5, kind: input, shape index: {}]
  %s6 = inlined_call_operand.hbm [shape: f32[2,8,128], index: 6, kind: output, shape index: {}]
  %s7 = sld [smem:[#allocation0]]
  $region61: #{tpu_custom_call.1} parent=0
    _
  %s9 = ssub.s32 1, %s7
  %s10 = scalar_select 0, %s9, %s7
  $region1: #{tpu_custom_call.1} parent=0
    #allocation2 [shape = 'u8[16384]{0}', space=vmem, size = 0x4000, scoped, tag = 'input window, operand 0']
    #allocation3 [shape = 's32[2]{0}', space=sflag, size = 0x8, scoped, tag = 'scoped memory for tpu_custom_call.1']
    #allocation4 [shape = 's32[2]{0}', space=sflag, size = 0x8, scoped, tag = 'scoped memory for tpu_custom_call.1']
    #allocation5 [shape = 'u8[8192]{0}', space=vmem, size = 0x2000, scoped, tag = 'output window, operand 0']
    %11 = vsyncpa [#allocation3], 0
    %s12 = scalar_lea.sflag [#allocation3], 1
    %13 = vsyncpa %s12, 0
    %14 = vsyncpa [#allocation4], 0
    %s15 = scalar_lea.sflag [#allocation4], 1
    %16 = vsyncpa %s15, 0
    loop: start=0, step=1, limit=4
    $region2: #{tpu_custom_call.1} parent=1 // loop_pre_header
      _
    $region3: #{tpu_custom_call.1} parent=1 // loop_header
      %s18 = sphi 0, %s22
      %p19 = scmp.ge.s32.totalorder %s18, 4
      %s25 = sphi 0, %s37
      %s26 = sphi 0, %s33
      %s27 = sphi 0, %s25
      %s28 = sphi 0, %s26
      %s29 = sphi 0, %s27
      %s30 = sphi 0, %s28
      %s42 = sphi 0, %s44
      %s45 = sphi 0, %s42
      %s46 = sphi 0, %s45
      %s62 = sphi 0, %s46
      %s66 = sphi 0, %s66
      %s68 = sphi 0, %s66
      %s69 = sphi 0, %s68
      %s83 = sphi 0, %s69
      %s87 = sphi 0, %s87
      %s89 = sphi 0, %s87
      %s90 = sphi 0, %s89
      %s104 = sphi 0, %s90
      %s108 = sphi 0, %s108
      %s110 = sphi 0, %s108
      %s111 = sphi 0, %s110
      %s125 = sphi 0, %s111
      %s131 = sphi 0, %s133
      %s134 = sphi 0, %s131
      %s135 = sphi 0, %s134
      %s151 = sphi 0, %s135
      %s157 = sphi 0, %s159
      %s160 = sphi 0, %s157
      %s161 = sphi 0, %s160
      %s177 = sphi 0, %s161
      %s185 = sphi 0, %s187
      %s188 = sphi 0, %s185
      %s189 = sphi 0, %s188
      %s205 = sphi 0, %s189
    $region4: #{tpu_custom_call.1} parent=1 // loop_header_branch
      %21 = sbr.rel (%p19) target = $region8
    $region5: #{tpu_custom_call.1} parent=1 // loop_body
      %s23 = ssub.s32 %s18, 1
      %s24 = ssub.s32 %s18, 2
      %s31 = sadd.s32 1, %s26
      %p32 = scmp.ge.s32.totalorder %s31, 1
      %s33 = scalar_select %p32, 0, %s31
      %s34 = sadd.s32 1, %s25
      %s35 = scalar_select %p32, %s34, %s25
      %p36 = scmp.ge.s32.totalorder %s35, 2
      %s37 = scalar_select %p36, 0, %s35
      %s38 = ssub.s32 %s25, %s37
      %s39 = ssub.s32 %s26, %s33
      %s40 = sor.u32 %s38, %s39
      %p41 = scmp.eq.s32.totalorder %s40, 0
      %s43 = sadd.s32 %s42, 1
      %s44 = scalar_select %p41, %s42, %s43
      %p47 = pneg %p41
      %p48 = scmp.eq.s32.totalorder %s18, 1
      %p49 = por %p47, %p48
      %p50 = scmp.ne.s32.totalorder %s42, %s45
      %p51 = scmp.eq.s32.totalorder %s18, 0
      %p52 = por %p50, %p51
      %p53 = scmp.ne.s32.totalorder %s42, %s45
      %p54 = scmp.eq.s32.totalorder %s23, 1
      %p55 = por %p53, %p54
      %p56 = scmp.ne.s32.totalorder %s45, %s46
      %p57 = scmp.eq.s32.totalorder %s23, 0
      %p58 = por %p56, %p57
      %p59 = scmp.ne.s32.totalorder %s45, %s46
      %p60 = scmp.eq.s32.totalorder %s24, 1
      %p61 = por %p59, %p60
      %p63 = scmp.ne.s32.totalorder %s46, %s62
      %p64 = scmp.eq.s32.totalorder %s24, 0
      %p65 = por %p63, %p64
      %s67 = sadd.s32 %s66, 1
      %p70 = scmp.eq.s32.totalorder %s18, 1
      %p71 = scmp.ne.s32.totalorder %s66, %s68
      %p72 = scmp.eq.s32.totalorder %s18, 0
      %p73 = por %p71, %p72
      %p74 = scmp.ne.s32.totalorder %s66, %s68
      %p75 = scmp.eq.s32.totalorder %s23, 1
      %p76 = por %p74, %p75
      %p77 = scmp.ne.s32.totalorder %s68, %s69
      %p78 = scmp.eq.s32.totalorder %s23, 0
      %p79 = por %p77, %p78
      %p80 = scmp.ne.s32.totalorder %s68, %s69
      %p81 = scmp.eq.s32.totalorder %s24, 1
      %p82 = por %p80, %p81
      %p84 = scmp.ne.s32.totalorder %s69, %s83
      %p85 = scmp.eq.s32.totalorder %s24, 0
      %p86 = por %p84, %p85
      %s88 = sadd.s32 %s87, 1
      %p91 = scmp.eq.s32.totalorder %s18, 1
      %p92 = scmp.ne.s32.totalorder %s87, %s89
      %p93 = scmp.eq.s32.totalorder %s18, 0
      %p94 = por %p92, %p93
      %p95 = scmp.ne.s32.totalorder %s87, %s89
      %p96 = scmp.eq.s32.totalorder %s23, 1
      %p97 = por %p95, %p96
      %p98 = scmp.ne.s32.totalorder %s89, %s90
      %p99 = scmp.eq.s32.totalorder %s23, 0
      %p100 = por %p98, %p99
      %p101 = scmp.ne.s32.totalorder %s89, %s90
      %p102 = scmp.eq.s32.totalorder %s24, 1
      %p103 = por %p101, %p102
      %p105 = scmp.ne.s32.totalorder %s90, %s104
      %p106 = scmp.eq.s32.totalorder %s24, 0
      %p107 = por %p105, %p106
      %s109 = sadd.s32 %s108, 1
      %p112 = scmp.eq.s32.totalorder %s18, 1
      %p113 = scmp.ne.s32.totalorder %s108, %s110
      %p114 = scmp.eq.s32.totalorder %s18, 0
      %p115 = por %p113, %p114
      %p116 = scmp.ne.s32.totalorder %s108, %s110
      %p117 = scmp.eq.s32.totalorder %s23, 1
      %p118 = por %p116, %p117
      %p119 = scmp.ne.s32.totalorder %s110, %s111
      %p120 = scmp.eq.s32.totalorder %s23, 0
      %p121 = por %p119, %p120
      %p122 = scmp.ne.s32.totalorder %s110, %s111
      %p123 = scmp.eq.s32.totalorder %s24, 1
      %p124 = por %p122, %p123
      %p126 = scmp.ne.s32.totalorder %s111, %s125
      %p127 = scmp.eq.s32.totalorder %s24, 0
      %p128 = por %p126, %p127
      %s129 = ssub.s32 %s26, %s33
      %p130 = scmp.eq.s32.totalorder %s129, 0
      %s132 = sadd.s32 %s131, 1
      %s133 = scalar_select %p130, %s131, %s132
      %p136 = pneg %p130
      %p137 = scmp.eq.s32.totalorder %s18, 1
      %p138 = por %p136, %p137
      %p139 = scmp.ne.s32.totalorder %s131, %s134
      %p140 = scmp.eq.s32.totalorder %s18, 0
      %p141 = por %p139, %p140
      %p142 = scmp.ne.s32.totalorder %s131, %s134
      %p143 = scmp.eq.s32.totalorder %s23, 1
      %p144 = por %p142, %p143
      %p145 = scmp.ne.s32.totalorder %s134, %s135
      %p146 = scmp.eq.s32.totalorder %s23, 0
      %p147 = por %p145, %p146
      %p148 = scmp.ne.s32.totalorder %s134, %s135
      %p149 = scmp.eq.s32.totalorder %s24, 1
      %p150 = por %p148, %p149
      %p152 = scmp.ne.s32.totalorder %s135, %s151
      %p153 = scmp.eq.s32.totalorder %s24, 0
      %p154 = por %p152, %p153
      %s155 = ssub.s32 %s26, %s33
      %p156 = scmp.eq.s32.totalorder %s155, 0
      %s158 = sadd.s32 %s157, 1
      %s159 = scalar_select %p156, %s157, %s158
      %p162 = pneg %p156
      %p163 = scmp.eq.s32.totalorder %s18, 1
      %p164 = por %p162, %p163
      %p165 = scmp.ne.s32.totalorder %s157, %s160
      %p166 = scmp.eq.s32.totalorder %s18, 0
      %p167 = por %p165, %p166
      %p168 = scmp.ne.s32.totalorder %s157, %s160
      %p169 = scmp.eq.s32.totalorder %s23, 1
      %p170 = por %p168, %p169
      %p171 = scmp.ne.s32.totalorder %s160, %s161
      %p172 = scmp.eq.s32.totalorder %s23, 0
      %p173 = por %p171, %p172
      %p174 = scmp.ne.s32.totalorder %s160, %s161
      %p175 = scmp.eq.s32.totalorder %s24, 1
      %p176 = por %p174, %p175
      %p178 = scmp.ne.s32.totalorder %s161, %s177
      %p179 = scmp.eq.s32.totalorder %s24, 0
      %p180 = por %p178, %p179
      %s181 = ssub.s32 %s25, %s37
      %s182 = ssub.s32 %s26, %s33
      %s183 = sor.u32 %s181, %s182
      %p184 = scmp.eq.s32.totalorder %s183, 0
      %s186 = sadd.s32 %s185, 1
      %s187 = scalar_select %p184, %s185, %s186
      %p190 = pneg %p184
      %p191 = scmp.eq.s32.totalorder %s18, 1
      %p192 = por %p190, %p191
      %p193 = scmp.ne.s32.totalorder %s185, %s188
      %p194 = scmp.eq.s32.totalorder %s18, 0
      %p195 = por %p193, %p194
      %p196 = scmp.ne.s32.totalorder %s185, %s188
      %p197 = scmp.eq.s32.totalorder %s23, 1
      %p198 = por %p196, %p197
      %p199 = scmp.ne.s32.totalorder %s188, %s189
      %p200 = scmp.eq.s32.totalorder %s23, 0
      %p201 = por %p199, %p200
      %p202 = scmp.ne.s32.totalorder %s188, %s189
      %p203 = scmp.eq.s32.totalorder %s24, 1
      %p204 = por %p202, %p203
      %p206 = scmp.ne.s32.totalorder %s189, %s205
      %p207 = scmp.eq.s32.totalorder %s24, 0
      %p208 = por %p206, %p207
      %p209 = scmp.le.s32.totalorder 1, %s18
      %p210 = scmp.lt.s32.totalorder %s18, 3
      %p211 = pnand %p209, %p210
      %p212 = pneg %p211
      // Predicated region
      $region9: #{tpu_custom_call.1} parent=5 // pred_check
        _
      $region10: #{tpu_custom_call.1} parent=5 // pred_check_branch
        %214 = sbr.rel (%p211) target = $region12
      $region11: #{tpu_custom_call.1} parent=5 // pred_region
        %s215 = ssub.s32 %s18, 1
        // Predicated region
        $region13: #{tpu_custom_call.1} parent=11 // pred_check
          %p216 = pneg %p79
        $region14: #{tpu_custom_call.1} parent=11 // pred_check_branch
          %218 = sbr.rel (%p216) target = $region16
        $region15: #{tpu_custom_call.1} parent=11 // pred_region
          _
        $region16: #{tpu_custom_call.1} parent=11 // pred_fallthru
          _
        // Predicated region
        $region17: #{tpu_custom_call.1} parent=11 // pred_check
          %p219 = pneg %p100
        $region18: #{tpu_custom_call.1} parent=11 // pred_check_branch
          %221 = sbr.rel (%p219) target = $region20
        $region19: #{tpu_custom_call.1} parent=11 // pred_region
          _
        $region20: #{tpu_custom_call.1} parent=11 // pred_fallthru
          _
        // Predicated region
        $region21: #{tpu_custom_call.1} parent=11 // pred_check
          %p222 = pneg %p121
        $region22: #{tpu_custom_call.1} parent=11 // pred_check_branch
          %224 = sbr.rel (%p222) target = $region24
        $region23: #{tpu_custom_call.1} parent=11 // pred_region
          _
        $region24: #{tpu_custom_call.1} parent=11 // pred_fallthru
          _
        // Predicated region
        $region25: #{tpu_custom_call.1} parent=11 // pred_check
          %p225 = pneg %p147
        $region26: #{tpu_custom_call.1} parent=11 // pred_check_branch
          %227 = sbr.rel (%p225) target = $region28
        $region27: #{tpu_custom_call.1} parent=11 // pred_region
          %p228 = scmp.lt.s32.totalorder %s28, 0
          %s229 = scalar_select %p228, %s28, 0
          %s230 = scalar_lea.vmem %s4, %s229
        $region28: #{tpu_custom_call.1} parent=11 // pred_fallthru
          _
        // Predicated region
        $region29: #{tpu_custom_call.1} parent=11 // pred_check
          %p231 = pneg %p173
        $region30: #{tpu_custom_call.1} parent=11 // pred_check_branch
          %233 = sbr.rel (%p231) target = $region32
        $region31: #{tpu_custom_call.1} parent=11 // pred_region
          %p234 = scmp.lt.s32.totalorder %s28, 0
          %s235 = scalar_select %p234, %s28, 0
          %s236 = scalar_lea.vmem %s5, %s235
        $region32: #{tpu_custom_call.1} parent=11 // pred_fallthru
          _
      $region12: #{tpu_custom_call.1} parent=5 // pred_fallthru
        _
      %p237 = scmp.lt.s32.totalorder %s18, 2
      // Predicated region
      $region33: #{tpu_custom_call.1} parent=5 // pred_check
        %p238 = pneg %p237
      $region34: #{tpu_custom_call.1} parent=5 // pred_check_branch
        %240 = sbr.rel (%p238) target = $region36
      $region35: #{tpu_custom_call.1} parent=5 // pred_region
        // Predicated region
        $region37: #{tpu_custom_call.1} parent=35 // pred_check
          %p241 = pneg %p52
        $region38: #{tpu_custom_call.1} parent=35 // pred_check_branch
          %243 = sbr.rel (%p241) target = $region40
        $region39: #{tpu_custom_call.1} parent=35 // pred_region
          %s244 = sand.u32 %s42, 1
          %s245 = scalar_lea.sflag [#allocation3], %s244
          %s246 = sand.u32 %s42, 1
          %s247 = smul.addr %s246, 16
          %s248 = scalar_lea.vmem [#allocation2], %s247
          %250 = vsyncadd %s245, 0
          %s251 = smul.addr %s25, 2
          %s252 = sadd.s32 %s26, %s251
          %s253 = smul.addr %s252, 8
          %s254 = scalar_lea.hbm %s0, %s253
          %s255 = sshll.u32 %s254, 4
          %s256 = int_to_ptr.hbm [resolvable:$true] %s255
          %s257 = sshll.u32 %s248, 4
          %s258 = int_to_ptr.vmem [resolvable:$true] %s257
          %263 = dma.hbm_to_vmem [thread:$0]  %s256, 256, %s258, %s245, 128, 128, 8
        $region40: #{tpu_custom_call.1} parent=35 // pred_fallthru
          _
      $region36: #{tpu_custom_call.1} parent=5 // pred_fallthru
        _
      %p264 = scmp.le.s32.totalorder 1, %s18
      %p265 = scmp.lt.s32.totalorder %s18, 3
      %p266 = pnand %p264, %p265
      %p267 = pneg %p266
      // Predicated region
      $region41: #{tpu_custom_call.1} parent=5 // pred_check
        _
      $region42: #{tpu_custom_call.1} parent=5 // pred_check_branch
        %269 = sbr.rel (%p266) target = $region44
      $region43: #{tpu_custom_call.1} parent=5 // pred_region
        %s270 = ssub.s32 %s18, 1
        %s271 = sand.u32 %s45, 1
        %s272 = scalar_lea.sflag [#allocation3], %s271
        %s273 = sand.u32 %s45, 1
        %s274 = smul.addr %s273, 16
        %s275 = scalar_lea.vmem [#allocation2], %s274
        // Predicated region
        $region45: #{tpu_custom_call.1} parent=43 // pred_check
          %p276 = pneg %p58
        $region46: #{tpu_custom_call.1} parent=43 // pred_check_branch
          %278 = sbr.rel (%p276) target = $region48
        $region47: #{tpu_custom_call.1} parent=43 // pred_region
          %280 = dma.done %s272, 256
        $region48: #{tpu_custom_call.1} parent=43 // pred_fallthru
          _
        %s281 = sand.u32 %s45, 1
        %s282 = scalar_lea.sflag [#allocation3], %s281
        %s283 = sand.u32 %s45, 1
        %s284 = smul.addr %s283, 16
        %s285 = scalar_lea.vmem [#allocation2], %s284
        %p286 = pneg %p58
        %p287 = pneg %p55
        %p288 = pneg %p79
        %p289 = pneg %p76
        %p290 = pneg %p100
        %p291 = pneg %p97
        %p292 = pneg %p121
        %p293 = pneg %p118
        %p294 = scmp.lt.s32.totalorder %s28, 0
        %s295 = scalar_select %p294, %s28, 0
        %s296 = scalar_lea.vmem %s4, %s295
        %p297 = pneg %p147
        %p298 = pneg %p144
        %p299 = scmp.lt.s32.totalorder %s28, 0
        %s300 = scalar_select %p299, %s28, 0
        %s301 = scalar_lea.vmem %s5, %s300
        %p302 = pneg %p173
        %p303 = pneg %p170
        %p304 = pneg %p201
        %p305 = pneg %p198
        %s306 = sand.u32 %s188, 1
        %s307 = scalar_lea.sflag [#allocation4], %s306
        %s308 = sand.u32 %s188, 1
        %s309 = smul.addr %s308, 8
        %s310 = scalar_lea.vmem [#allocation5], %s309
        %p311 = scmp.lt.s32.totalorder %s28, 0
        %s312 = scalar_select %p311, %s28, 0
        %s313 = scalar_lea.vmem %s4, %s312
        %p314 = scmp.lt.s32.totalorder %s28, 0
        %s315 = scalar_select %p314, %s28, 0
        %s316 = scalar_lea.vmem %s5, %s315
        %v317 = vld [vmem:[%s275] sm:$0xff]
        %v318 = vld [vmem:[%s275 + $0x8] sm:$0xff]
        %v319 = vadd.f32 %v317, %v318
        %v320 = vrot.slane %v319, 4
        %v321 = vadd.f32 %v319, %v320
        %v322 = vrot.slane %v321, 2
        %v323 = vadd.f32 %v321, %v322
        %v324 = vrot.slane %v323, 1
        %v325 = vadd.f32 %v323, %v324
        %v326 = vrcp.pop 16.0
        %v327 = vmul.f32 16.0, %v326
        %v328 = vsub.f32 1.0, %v327
        %v329 = vmul.f32 %v326, %v328
        %v330 = vadd.f32 %v326, %v329
        %vm331 = vweird.f32 %v326
        %v332 = vsel %vm331, %v326, %v330
        %v333 = vmul.f32 %v325, %v332
        %v334 = vsub.f32 %v317, %v333
        %v335 = vsub.f32 %v318, %v333
        %v336 = vmul.f32 %v334, %v334
        %v337 = vmul.f32 %v335, %v335
        %v338 = vadd.f32 %v336, %v337
        %v339 = vrot.slane %v338, 4
        %v340 = vadd.f32 %v338, %v339
        %v341 = vrot.slane %v340, 2
        %v342 = vadd.f32 %v340, %v341
        %v343 = vrot.slane %v342, 1
        %v344 = vadd.f32 %v342, %v343
        %v345 = vmul.f32 %v344, %v332
        %v346 = vadd.f32 %v345, 1e-05
        %v347 = vrsqrt.pop %v346
        %v348 = vmul.f32 %v347, %v346
        %v349 = vmul.f32 %v348, %v347
        %v350 = vmul.f32 0.5, %v349
        %v351 = vsub.f32 1.5, %v350
        %v352 = vmul.f32 %v347, %v351
        %v353 = vmul.f32 %v346, %v352
        %vm354 = vcmp.eq.f32.partialorder %v346, inf
        %v355 = vsel %vm354, %v346, %v353
        %vm356 = vcmp.eq.f32.partialorder %v346, 0.0
        %v357 = vand.u32 %v346, 2147483648
        %v358 = vsel %vm356, %v357, %v355
        %v359 = vld [vmem:[%s313] sm:$0x1]
        %v360 = vld [vmem:[%s316] sm:$0x1]
        %v361 = vrcp.pop %v358
        %v362 = vmul.f32 %v358, %v361
        %v363 = vsub.f32 1.0, %v362
        %v364 = vmul.f32 %v361, %v363
        %v365 = vadd.f32 %v361, %v364
        %vm366 = vweird.f32 %v358
        %vm367 = vweird.f32 %v361
        %vm368 = vmor %vm366, %vm367
        %v369 = vsel %vm368, %v361, %v365
        %v370 = vand.u32 2147483647, %v358
        %vm371 = vcmp.eq.f32.partialorder %v370, 8.507059e+37
        %v372 = vand.u32 %v358, 2147483648
        %v373 = vor.u32 1.1754944e-38, %v372
        %v374 = vsel %vm371, %v373, %v369
        %v375 = vmul.f32 %v359, %v374
        %v377 = vperm.slane %v375, 0
        %v379 = vmul.f32 %v334, %v377
        %v380 = vmul.f32 %v335, %v377
        %v381 = vld [vmem:[%s1] sm:$0xff]
        %382 = vxpose.xlu0.b32.start [1/16] %v379, 128
        %383 = vxpose.xlu0.b32.cont [2/16] %v380, 128
        %384 = vxpose.xlu0.b32.cont [3/16] 0.0, 128
        %385 = vxpose.xlu0.b32.cont [4/16] 0.0, 128
        %386 = vxpose.xlu0.b32.cont [5/16] 0.0, 128
        %387 = vxpose.xlu0.b32.cont [6/16] 0.0, 128
        %388 = vxpose.xlu0.b32.cont [7/16] 0.0, 128
        %389 = vxpose.xlu0.b32.cont [8/16] 0.0, 128
        %390 = vxpose.xlu0.b32.cont [9/16] 0.0, 128
        %391 = vxpose.xlu0.b32.cont [10/16] 0.0, 128
        %392 = vxpose.xlu0.b32.cont [11/16] 0.0, 128
        %393 = vxpose.xlu0.b32.cont [12/16] 0.0, 128
        %394 = vxpose.xlu0.b32.cont [13/16] 0.0, 128
        %395 = vxpose.xlu0.b32.cont [14/16] 0.0, 128
        %396 = vxpose.xlu0.b32.cont [15/16] 0.0, 128
        %397 = vxpose.xlu0.b32.end [16/16] 0.0, 128
        %v398 = vpop.trf.xlu0
        %v399 = vpop.trf.xlu0
        %v400 = vpop.trf.xlu0
        %v401 = vpop.trf.xlu0
        %v402 = vpop.trf.xlu0
        %v403 = vpop.trf.xlu0
        %v404 = vpop.trf.xlu0
        %v405 = vpop.trf.xlu0
        %v406 = vpop.trf.xlu0
        %v407 = vpop.trf.xlu0
        %v408 = vpop.trf.xlu0
        %v409 = vpop.trf.xlu0
        %v410 = vpop.trf.xlu0
        %v411 = vpop.trf.xlu0
        %v412 = vpop.trf.xlu0
        %v413 = vpop.trf.xlu0
        %vm414 = vcmask 130048
        %v416 = vsel %vm414, %v398, 0
        %v419 = vsel %vm414, %v399, 0
        %v422 = vsel %vm414, %v400, 0
        %v425 = vsel %vm414, %v401, 0
        %v428 = vsel %vm414, %v402, 0
        %v431 = vsel %vm414, %v403, 0
        %v434 = vsel %vm414, %v404, 0
        %v437 = vsel %vm414, %v405, 0
        %v440 = vsel %vm414, %v406, 0
        %v443 = vsel %vm414, %v407, 0
        %v446 = vsel %vm414, %v408, 0
        %v449 = vsel %vm414, %v409, 0
        %v452 = vsel %vm414, %v410, 0
        %v455 = vsel %vm414, %v411, 0
        %v458 = vsel %vm414, %v412, 0
        %v461 = vsel %vm414, %v413, 0
        %v464 = vsel %vm414, %v381, 0
        %466 = vmatpush.xpose.msra.mxu0 0.0
        %467 = vmatpush.xpose.msra.mxu0 0.0
        %468 = vmatpush.xpose.msra.mxu0 0.0
        %469 = vmatpush.xpose.msra.mxu0 0.0
        %470 = vmatpush.xpose.msra.mxu0 0.0
        %471 = vmatpush.xpose.msra.mxu0 0.0
        %472 = vmatpush.xpose.msra.mxu0 0.0
        %473 = vmatpush.xpose.msra.mxu0 0.0
        %474 = vmatpush.xpose.msra.mxu0 0.0
        %475 = vmatpush.xpose.msra.mxu0 0.0
        %476 = vmatpush.xpose.msra.mxu0 0.0
        %477 = vmatpush.xpose.msra.mxu0 0.0
        %478 = vmatpush.xpose.msra.mxu0 0.0
        %479 = vmatpush.xpose.msra.mxu0 0.0
        %480 = vmatpush.xpose.msra.mxu0 0.0
        %v481 = vand.u32 %v464, 4294901760
        %482 = vmatpush.xpose.msra.mxu0 %v481
        %v483 = vand.u32 %v416, 4294901760
        %v484 = vsub.f32 %v416, %v483
        %v485 = vand.u32 %v484, 4294901760
        %v486 = vsub.f32 %v484, %v485
        %v487 = vand.u32 %v486, 4294901760
        %488 = vmatmul.f32.gmra.mxu0 %v487
        %v489 = vpop.f32.mrf.mxu0
        %v490 = vadd.f32 0.0, %v489
        %v491 = vand.u32 %v419, 4294901760
        %v492 = vsub.f32 %v419, %v491
        %v493 = vand.u32 %v492, 4294901760
        %v494 = vsub.f32 %v492, %v493
        %v495 = vand.u32 %v494, 4294901760
        %496 = vmatmul.f32.gmra.mxu0 %v495
        %v497 = vpop.f32.mrf.mxu0
        %v498 = vadd.f32 0.0, %v497
        %v499 = vand.u32 %v422, 4294901760
        %v500 = vsub.f32 %v422, %v499
        %v501 = vand.u32 %v500, 4294901760
        %v502 = vsub.f32 %v500, %v501
        %v503 = vand.u32 %v502, 4294901760
        %504 = vmatmul.f32.gmra.mxu0 %v503
        %v505 = vpop.f32.mrf.mxu0
        %v506 = vadd.f32 0.0, %v505
        %v507 = vand.u32 %v425, 4294901760
        %v508 = vsub.f32 %v425, %v507
        %v509 = vand.u32 %v508, 4294901760
        %v510 = vsub.f32 %v508, %v509
        %v511 = vand.u32 %v510, 4294901760
        %512 = vmatmul.f32.gmra.mxu0 %v511
        %v513 = vpop.f32.mrf.mxu0
        %v514 = vadd.f32 0.0, %v513
        %v515 = vand.u32 %v428, 4294901760
        %v516 = vsub.f32 %v428, %v515
        %v517 = vand.u32 %v516, 4294901760
        %v518 = vsub.f32 %v516, %v517
        %v519 = vand.u32 %v518, 4294901760
        %520 = vmatmul.f32.gmra.mxu0 %v519
        %v521 = vpop.f32.mrf.mxu0
        %v522 = vadd.f32 0.0, %v521
        %v523 = vand.u32 %v431, 4294901760
        %v524 = vsub.f32 %v431, %v523
        %v525 = vand.u32 %v524, 4294901760
        %v526 = vsub.f32 %v524, %v525
        %v527 = vand.u32 %v526, 4294901760
        %528 = vmatmul.f32.gmra.mxu0 %v527
        %v529 = vpop.f32.mrf.mxu0
        %v530 = vadd.f32 0.0, %v529
        %v531 = vand.u32 %v434, 4294901760
        %v532 = vsub.f32 %v434, %v531
        %v533 = vand.u32 %v532, 4294901760
        %v534 = vsub.f32 %v532, %v533
        %v535 = vand.u32 %v534, 4294901760
        %536 = vmatmul.f32.gmra.mxu0 %v535
        %v537 = vpop.f32.mrf.mxu0
        %v538 = vadd.f32 0.0, %v537
        %v539 = vand.u32 %v437, 4294901760
        %v540 = vsub.f32 %v437, %v539
        %v541 = vand.u32 %v540, 4294901760
        %v542 = vsub.f32 %v540, %v541
        %v543 = vand.u32 %v542, 4294901760
        %544 = vmatmul.f32.gmra.mxu0 %v543
        %v545 = vpop.f32.mrf.mxu0
        %v546 = vadd.f32 0.0, %v545
        %v547 = vand.u32 %v440, 4294901760
        %v548 = vsub.f32 %v440, %v547
        %v549 = vand.u32 %v548, 4294901760
        %v550 = vsub.f32 %v548, %v549
        %v551 = vand.u32 %v550, 4294901760
        %552 = vmatmul.f32.gmra.mxu0 %v551
        %v553 = vpop.f32.mrf.mxu0
        %v554 = vadd.f32 0.0, %v553
        %v555 = vand.u32 %v443, 4294901760
        %v556 = vsub.f32 %v443, %v555
        %v557 = vand.u32 %v556, 4294901760
        %v558 = vsub.f32 %v556, %v557
        %v559 = vand.u32 %v558, 4294901760
        %560 = vmatmul.f32.gmra.mxu0 %v559
        %v561 = vpop.f32.mrf.mxu0
        %v562 = vadd.f32 0.0, %v561
        %v563 = vand.u32 %v446, 4294901760
        %v564 = vsub.f32 %v446, %v563
        %v565 = vand.u32 %v564, 4294901760
        %v566 = vsub.f32 %v564, %v565
        %v567 = vand.u32 %v566, 4294901760
        %568 = vmatmul.f32.gmra.mxu0 %v567
        %v569 = vpop.f32.mrf.mxu0
        %v570 = vadd.f32 0.0, %v569
        %v571 = vand.u32 %v449, 4294901760
        %v572 = vsub.f32 %v449, %v571
        %v573 = vand.u32 %v572, 4294901760
        %v574 = vsub.f32 %v572, %v573
        %v575 = vand.u32 %v574, 4294901760
        %576 = vmatmul.f32.gmra.mxu0 %v575
        %v577 = vpop.f32.mrf.mxu0
        %v578 = vadd.f32 0.0, %v577
        %v579 = vand.u32 %v452, 4294901760
        %v580 = vsub.f32 %v452, %v579
        %v581 = vand.u32 %v580, 4294901760
        %v582 = vsub.f32 %v580, %v581
        %v583 = vand.u32 %v582, 4294901760
        %584 = vmatmul.f32.gmra.mxu0 %v583
        %v585 = vpop.f32.mrf.mxu0
        %v586 = vadd.f32 0.0, %v585
        %v587 = vand.u32 %v455, 4294901760
        %v588 = vsub.f32 %v455, %v587
        %v589 = vand.u32 %v588, 4294901760
        %v590 = vsub.f32 %v588, %v589
        %v591 = vand.u32 %v590, 4294901760
        %592 = vmatmul.f32.gmra.mxu0 %v591
        %v593 = vpop.f32.mrf.mxu0
        %v594 = vadd.f32 0.0, %v593
        %v595 = vand.u32 %v458, 4294901760
        %v596 = vsub.f32 %v458, %v595
        %v597 = vand.u32 %v596, 4294901760
        %v598 = vsub.f32 %v596, %v597
        %v599 = vand.u32 %v598, 4294901760
        %600 = vmatmul.f32.gmra.mxu0 %v599
        %v601 = vpop.f32.mrf.mxu0
        %v602 = vadd.f32 0.0, %v601
        %v603 = vand.u32 %v461, 4294901760
        %v604 = vsub.f32 %v461, %v603
        %v605 = vand.u32 %v604, 4294901760
        %v606 = vsub.f32 %v604, %v605
        %v607 = vand.u32 %v606, 4294901760
        %608 = vmatmul.f32.gmra.mxu0 %v607
        %v609 = vpop.f32.mrf.mxu0
        %v610 = vadd.f32 0.0, %v609
        %611 = vdwg.mxu0
        %612 = vmatpush.xpose.msra.mxu0 0.0
        %613 = vmatpush.xpose.msra.mxu0 0.0
        %614 = vmatpush.xpose.msra.mxu0 0.0
        %615 = vmatpush.xpose.msra.mxu0 0.0
        %616 = vmatpush.xpose.msra.mxu0 0.0
        %617 = vmatpush.xpose.msra.mxu0 0.0
        %618 = vmatpush.xpose.msra.mxu0 0.0
        %619 = vmatpush.xpose.msra.mxu0 0.0
        %620 = vmatpush.xpose.msra.mxu0 0.0
        %621 = vmatpush.xpose.msra.mxu0 0.0
        %622 = vmatpush.xpose.msra.mxu0 0.0
        %623 = vmatpush.xpose.msra.mxu0 0.0
        %624 = vmatpush.xpose.msra.mxu0 0.0
        %625 = vmatpush.xpose.msra.mxu0 0.0
        %626 = vmatpush.xpose.msra.mxu0 0.0
        %v627 = vand.u32 %v464, 4294901760
        %v628 = vsub.f32 %v464, %v627
        %v629 = vand.u32 %v628, 4294901760
        %v630 = vsub.f32 %v628, %v629
        %v631 = vand.u32 %v630, 4294901760
        %632 = vmatpush.xpose.msra.mxu0 %v631
        %v633 = vand.u32 %v416, 4294901760
        %634 = vmatmul.f32.gmra.mxu0 %v633
        %v635 = vpop.f32.mrf.mxu0
        %v636 = vadd.f32 %v490, %v635
        %v637 = vand.u32 %v419, 4294901760
        %638 = vmatmul.f32.gmra.mxu0 %v637
        %v639 = vpop.f32.mrf.mxu0
        %v640 = vadd.f32 %v498, %v639
        %v641 = vand.u32 %v422, 4294901760
        %642 = vmatmul.f32.gmra.mxu0 %v641
        %v643 = vpop.f32.mrf.mxu0
        %v644 = vadd.f32 %v506, %v643
        %v645 = vand.u32 %v425, 4294901760
        %646 = vmatmul.f32.gmra.mxu0 %v645
        %v647 = vpop.f32.mrf.mxu0
        %v648 = vadd.f32 %v514, %v647
        %v649 = vand.u32 %v428, 4294901760
        %650 = vmatmul.f32.gmra.mxu0 %v649
        %v651 = vpop.f32.mrf.mxu0
        %v652 = vadd.f32 %v522, %v651
        %v653 = vand.u32 %v431, 4294901760
        %654 = vmatmul.f32.gmra.mxu0 %v653
        %v655 = vpop.f32.mrf.mxu0
        %v656 = vadd.f32 %v530, %v655
        %v657 = vand.u32 %v434, 4294901760
        %658 = vmatmul.f32.gmra.mxu0 %v657
        %v659 = vpop.f32.mrf.mxu0
        %v660 = vadd.f32 %v538, %v659
        %v661 = vand.u32 %v437, 4294901760
        %662 = vmatmul.f32.gmra.mxu0 %v661
        %v663 = vpop.f32.mrf.mxu0
        %v664 = vadd.f32 %v546, %v663
        %v665 = vand.u32 %v440, 4294901760
        %666 = vmatmul.f32.gmra.mxu0 %v665
        %v667 = vpop.f32.mrf.mxu0
        %v668 = vadd.f32 %v554, %v667
        %v669 = vand.u32 %v443, 4294901760
        %670 = vmatmul.f32.gmra.mxu0 %v669
        %v671 = vpop.f32.mrf.mxu0
        %v672 = vadd.f32 %v562, %v671
        %v673 = vand.u32 %v446, 4294901760
        %674 = vmatmul.f32.gmra.mxu0 %v673
        %v675 = vpop.f32.mrf.mxu0
        %v676 = vadd.f32 %v570, %v675
        %v677 = vand.u32 %v449, 4294901760
        %678 = vmatmul.f32.gmra.mxu0 %v677
        %v679 = vpop.f32.mrf.mxu0
        %v680 = vadd.f32 %v578, %v679
        %v681 = vand.u32 %v452, 4294901760
        %682 = vmatmul.f32.gmra.mxu0 %v681
        %v683 = vpop.f32.mrf.mxu0
        %v684 = vadd.f32 %v586, %v683
        %v685 = vand.u32 %v455, 4294901760
        %686 = vmatmul.f32.gmra.mxu0 %v685
        %v687 = vpop.f32.mrf.mxu0
        %v688 = vadd.f32 %v594, %v687
        %v689 = vand.u32 %v458, 4294901760
        %690 = vmatmul.f32.gmra.mxu0 %v689
        %v691 = vpop.f32.mrf.mxu0
        %v692 = vadd.f32 %v602, %v691
        %v693 = vand.u32 %v461, 4294901760
        %694 = vmatmul.f32.gmra.mxu0 %v693
        %v695 = vpop.f32.mrf.mxu0
        %v696 = vadd.f32 %v610, %v695
        %697 = vdwg.mxu0
        %698 = vmatpush.xpose.msra.mxu0 0.0
        %699 = vmatpush.xpose.msra.mxu0 0.0
        %700 = vmatpush.xpose.msra.mxu0 0.0
        %701 = vmatpush.xpose.msra.mxu0 0.0
        %702 = vmatpush.xpose.msra.mxu0 0.0
        %703 = vmatpush.xpose.msra.mxu0 0.0
        %704 = vmatpush.xpose.msra.mxu0 0.0
        %705 = vmatpush.xpose.msra.mxu0 0.0
        %706 = vmatpush.xpose.msra.mxu0 0.0
        %707 = vmatpush.xpose.msra.mxu0 0.0
        %708 = vmatpush.xpose.msra.mxu0 0.0
        %709 = vmatpush.xpose.msra.mxu0 0.0
        %710 = vmatpush.xpose.msra.mxu0 0.0
        %711 = vmatpush.xpose.msra.mxu0 0.0
        %712 = vmatpush.xpose.msra.mxu0 0.0
        %v713 = vand.u32 %v464, 4294901760
        %v714 = vsub.f32 %v464, %v713
        %715 = vmatpush.xpose.msra.mxu0 %v714
        %v716 = vand.u32 %v416, 4294901760
        %v717 = vsub.f32 %v416, %v716
        %718 = vmatmul.f32.gmra.mxu0 %v717
        %v719 = vpop.f32.mrf.mxu0
        %v720 = vadd.f32 %v636, %v719
        %v721 = vand.u32 %v419, 4294901760
        %v722 = vsub.f32 %v419, %v721
        %723 = vmatmul.f32.gmra.mxu0 %v722
        %v724 = vpop.f32.mrf.mxu0
        %v725 = vadd.f32 %v640, %v724
        %v726 = vand.u32 %v422, 4294901760
        %v727 = vsub.f32 %v422, %v726
        %728 = vmatmul.f32.gmra.mxu0 %v727
        %v729 = vpop.f32.mrf.mxu0
        %v730 = vadd.f32 %v644, %v729
        %v731 = vand.u32 %v425, 4294901760
        %v732 = vsub.f32 %v425, %v731
        %733 = vmatmul.f32.gmra.mxu0 %v732
        %v734 = vpop.f32.mrf.mxu0
        %v735 = vadd.f32 %v648, %v734
        %v736 = vand.u32 %v428, 4294901760
        %v737 = vsub.f32 %v428, %v736
        %738 = vmatmul.f32.gmra.mxu0 %v737
        %v739 = vpop.f32.mrf.mxu0
        %v740 = vadd.f32 %v652, %v739
        %v741 = vand.u32 %v431, 4294901760
        %v742 = vsub.f32 %v431, %v741
        %743 = vmatmul.f32.gmra.mxu0 %v742
        %v744 = vpop.f32.mrf.mxu0
        %v745 = vadd.f32 %v656, %v744
        %v746 = vand.u32 %v434, 4294901760
        %v747 = vsub.f32 %v434, %v746
        %748 = vmatmul.f32.gmra.mxu0 %v747
        %v749 = vpop.f32.mrf.mxu0
        %v750 = vadd.f32 %v660, %v749
        %v751 = vand.u32 %v437, 4294901760
        %v752 = vsub.f32 %v437, %v751
        %753 = vmatmul.f32.gmra.mxu0 %v752
        %v754 = vpop.f32.mrf.mxu0
        %v755 = vadd.f32 %v664, %v754
        %v756 = vand.u32 %v440, 4294901760
        %v757 = vsub.f32 %v440, %v756
        %758 = vmatmul.f32.gmra.mxu0 %v757
        %v759 = vpop.f32.mrf.mxu0
        %v760 = vadd.f32 %v668, %v759
        %v761 = vand.u32 %v443, 4294901760
        %v762 = vsub.f32 %v443, %v761
        %763 = vmatmul.f32.gmra.mxu0 %v762
        %v764 = vpop.f32.mrf.mxu0
        %v765 = vadd.f32 %v672, %v764
        %v766 = vand.u32 %v446, 4294901760
        %v767 = vsub.f32 %v446, %v766
        %768 = vmatmul.f32.gmra.mxu0 %v767
        %v769 = vpop.f32.mrf.mxu0
        %v770 = vadd.f32 %v676, %v769
        %v771 = vand.u32 %v449, 4294901760
        %v772 = vsub.f32 %v449, %v771
        %773 = vmatmul.f32.gmra.mxu0 %v772
        %v774 = vpop.f32.mrf.mxu0
        %v775 = vadd.f32 %v680, %v774
        %v776 = vand.u32 %v452, 4294901760
        %v777 = vsub.f32 %v452, %v776
        %778 = vmatmul.f32.gmra.mxu0 %v777
        %v779 = vpop.f32.mrf.mxu0
        %v780 = vadd.f32 %v684, %v779
        %v781 = vand.u32 %v455, 4294901760
        %v782 = vsub.f32 %v455, %v781
        %783 = vmatmul.f32.gmra.mxu0 %v782
        %v784 = vpop.f32.mrf.mxu0
        %v785 = vadd.f32 %v688, %v784
        %v786 = vand.u32 %v458, 4294901760
        %v787 = vsub.f32 %v458, %v786
        %788 = vmatmul.f32.gmra.mxu0 %v787
        %v789 = vpop.f32.mrf.mxu0
        %v790 = vadd.f32 %v692, %v789
        %v791 = vand.u32 %v461, 4294901760
        %v792 = vsub.f32 %v461, %v791
        %793 = vmatmul.f32.gmra.mxu0 %v792
        %v794 = vpop.f32.mrf.mxu0
        %v795 = vadd.f32 %v696, %v794
        %796 = vdwg.mxu0
        %797 = vmatpush.xpose.msra.mxu0 0.0
        %798 = vmatpush.xpose.msra.mxu0 0.0
        %799 = vmatpush.xpose.msra.mxu0 0.0
        %800 = vmatpush.xpose.msra.mxu0 0.0
        %801 = vmatpush.xpose.msra.mxu0 0.0
        %802 = vmatpush.xpose.msra.mxu0 0.0
        %803 = vmatpush.xpose.msra.mxu0 0.0
        %804 = vmatpush.xpose.msra.mxu0 0.0
        %805 = vmatpush.xpose.msra.mxu0 0.0
        %806 = vmatpush.xpose.msra.mxu0 0.0
        %807 = vmatpush.xpose.msra.mxu0 0.0
        %808 = vmatpush.xpose.msra.mxu0 0.0
        %809 = vmatpush.xpose.msra.mxu0 0.0
        %810 = vmatpush.xpose.msra.mxu0 0.0
        %811 = vmatpush.xpose.msra.mxu0 0.0
        %v812 = vand.u32 %v464, 4294901760
        %813 = vmatpush.xpose.msra.mxu0 %v812
        %v814 = vand.u32 %v416, 4294901760
        %v815 = vsub.f32 %v416, %v814
        %v816 = vand.u32 %v815, 4294901760
        %817 = vmatmul.f32.gmra.mxu0 %v816
        %v818 = vpop.f32.mrf.mxu0
        %v819 = vadd.f32 %v720, %v818
        %v820 = vand.u32 %v419, 4294901760
        %v821 = vsub.f32 %v419, %v820
        %v822 = vand.u32 %v821, 4294901760
        %823 = vmatmul.f32.gmra.mxu0 %v822
        %v824 = vpop.f32.mrf.mxu0
        %v825 = vadd.f32 %v725, %v824
        %v826 = vand.u32 %v422, 4294901760
        %v827 = vsub.f32 %v422, %v826
        %v828 = vand.u32 %v827, 4294901760
        %829 = vmatmul.f32.gmra.mxu0 %v828
        %v830 = vpop.f32.mrf.mxu0
        %v831 = vadd.f32 %v730, %v830
        %v832 = vand.u32 %v425, 4294901760
        %v833 = vsub.f32 %v425, %v832
        %v834 = vand.u32 %v833, 4294901760
        %835 = vmatmul.f32.gmra.mxu0 %v834
        %v836 = vpop.f32.mrf.mxu0
        %v837 = vadd.f32 %v735, %v836
        %v838 = vand.u32 %v428, 4294901760
        %v839 = vsub.f32 %v428, %v838
        %v840 = vand.u32 %v839, 4294901760
        %841 = vmatmul.f32.gmra.mxu0 %v840
        %v842 = vpop.f32.mrf.mxu0
        %v843 = vadd.f32 %v740, %v842
        %v844 = vand.u32 %v431, 4294901760
        %v845 = vsub.f32 %v431, %v844
        %v846 = vand.u32 %v845, 4294901760
        %847 = vmatmul.f32.gmra.mxu0 %v846
        %v848 = vpop.f32.mrf.mxu0
        %v849 = vadd.f32 %v745, %v848
        %v850 = vand.u32 %v434, 4294901760
        %v851 = vsub.f32 %v434, %v850
        %v852 = vand.u32 %v851, 4294901760
        %853 = vmatmul.f32.gmra.mxu0 %v852
        %v854 = vpop.f32.mrf.mxu0
        %v855 = vadd.f32 %v750, %v854
        %v856 = vand.u32 %v437, 4294901760
        %v857 = vsub.f32 %v437, %v856
        %v858 = vand.u32 %v857, 4294901760
        %859 = vmatmul.f32.gmra.mxu0 %v858
        %v860 = vpop.f32.mrf.mxu0
        %v861 = vadd.f32 %v755, %v860
        %v862 = vand.u32 %v440, 4294901760
        %v863 = vsub.f32 %v440, %v862
        %v864 = vand.u32 %v863, 4294901760
        %865 = vmatmul.f32.gmra.mxu0 %v864
        %v866 = vpop.f32.mrf.mxu0
        %v867 = vadd.f32 %v760, %v866
        %v868 = vand.u32 %v443, 4294901760
        %v869 = vsub.f32 %v443, %v868
        %v870 = vand.u32 %v869, 4294901760
        %871 = vmatmul.f32.gmra.mxu0 %v870
        %v872 = vpop.f32.mrf.mxu0
        %v873 = vadd.f32 %v765, %v872
        %v874 = vand.u32 %v446, 4294901760
        %v875 = vsub.f32 %v446, %v874
        %v876 = vand.u32 %v875, 4294901760
        %877 = vmatmul.f32.gmra.mxu0 %v876
        %v878 = vpop.f32.mrf.mxu0
        %v879 = vadd.f32 %v770, %v878
        %v880 = vand.u32 %v449, 4294901760
        %v881 = vsub.f32 %v449, %v880
        %v882 = vand.u32 %v881, 4294901760
        %883 = vmatmul.f32.gmra.mxu0 %v882
        %v884 = vpop.f32.mrf.mxu0
        %v885 = vadd.f32 %v775, %v884
        %v886 = vand.u32 %v452, 4294901760
        %v887 = vsub.f32 %v452, %v886
        %v888 = vand.u32 %v887, 4294901760
        %889 = vmatmul.f32.gmra.mxu0 %v888
        %v890 = vpop.f32.mrf.mxu0
        %v891 = vadd.f32 %v780, %v890
        %v892 = vand.u32 %v455, 4294901760
        %v893 = vsub.f32 %v455, %v892
        %v894 = vand.u32 %v893, 4294901760
        %895 = vmatmul.f32.gmra.mxu0 %v894
        %v896 = vpop.f32.mrf.mxu0
        %v897 = vadd.f32 %v785, %v896
        %v898 = vand.u32 %v458, 4294901760
        %v899 = vsub.f32 %v458, %v898
        %v900 = vand.u32 %v899, 4294901760
        %901 = vmatmul.f32.gmra.mxu0 %v900
        %v902 = vpop.f32.mrf.mxu0
        %v903 = vadd.f32 %v790, %v902
        %v904 = vand.u32 %v461, 4294901760
        %v905 = vsub.f32 %v461, %v904
        %v906 = vand.u32 %v905, 4294901760
        %907 = vmatmul.f32.gmra.mxu0 %v906
        %v908 = vpop.f32.mrf.mxu0
        %v909 = vadd.f32 %v795, %v908
        %910 = vdwg.mxu0
        %911 = vmatpush.xpose.msra.mxu0 0.0
        %912 = vmatpush.xpose.msra.mxu0 0.0
        %913 = vmatpush.xpose.msra.mxu0 0.0
        %914 = vmatpush.xpose.msra.mxu0 0.0
        %915 = vmatpush.xpose.msra.mxu0 0.0
        %916 = vmatpush.xpose.msra.mxu0 0.0
        %917 = vmatpush.xpose.msra.mxu0 0.0
        %918 = vmatpush.xpose.msra.mxu0 0.0
        %919 = vmatpush.xpose.msra.mxu0 0.0
        %920 = vmatpush.xpose.msra.mxu0 0.0
        %921 = vmatpush.xpose.msra.mxu0 0.0
        %922 = vmatpush.xpose.msra.mxu0 0.0
        %923 = vmatpush.xpose.msra.mxu0 0.0
        %924 = vmatpush.xpose.msra.mxu0 0.0
        %925 = vmatpush.xpose.msra.mxu0 0.0
        %v926 = vand.u32 %v464, 4294901760
        %v927 = vsub.f32 %v464, %v926
        %v928 = vand.u32 %v927, 4294901760
        %929 = vmatpush.xpose.msra.mxu0 %v928
        %v930 = vand.u32 %v416, 4294901760
        %931 = vmatmul.f32.gmra.mxu0 %v930
        %v932 = vpop.f32.mrf.mxu0
        %v933 = vadd.f32 %v819, %v932
        %v934 = vand.u32 %v419, 4294901760
        %935 = vmatmul.f32.gmra.mxu0 %v934
        %v936 = vpop.f32.mrf.mxu0
        %v937 = vadd.f32 %v825, %v936
        %v938 = vand.u32 %v422, 4294901760
        %939 = vmatmul.f32.gmra.mxu0 %v938
        %v940 = vpop.f32.mrf.mxu0
        %v941 = vadd.f32 %v831, %v940
        %v942 = vand.u32 %v425, 4294901760
        %943 = vmatmul.f32.gmra.mxu0 %v942
        %v944 = vpop.f32.mrf.mxu0
        %v945 = vadd.f32 %v837, %v944
        %v946 = vand.u32 %v428, 4294901760
        %947 = vmatmul.f32.gmra.mxu0 %v946
        %v948 = vpop.f32.mrf.mxu0
        %v949 = vadd.f32 %v843, %v948
        %v950 = vand.u32 %v431, 4294901760
        %951 = vmatmul.f32.gmra.mxu0 %v950
        %v952 = vpop.f32.mrf.mxu0
        %v953 = vadd.f32 %v849, %v952
        %v954 = vand.u32 %v434, 4294901760
        %955 = vmatmul.f32.gmra.mxu0 %v954
        %v956 = vpop.f32.mrf.mxu0
        %v957 = vadd.f32 %v855, %v956
        %v958 = vand.u32 %v437, 4294901760
        %959 = vmatmul.f32.gmra.mxu0 %v958
        %v960 = vpop.f32.mrf.mxu0
        %v961 = vadd.f32 %v861, %v960
        %v962 = vand.u32 %v440, 4294901760
        %963 = vmatmul.f32.gmra.mxu0 %v962
        %v964 = vpop.f32.mrf.mxu0
        %v965 = vadd.f32 %v867, %v964
        %v966 = vand.u32 %v443, 4294901760
        %967 = vmatmul.f32.gmra.mxu0 %v966
        %v968 = vpop.f32.mrf.mxu0
        %v969 = vadd.f32 %v873, %v968
        %v970 = vand.u32 %v446, 4294901760
        %971 = vmatmul.f32.gmra.mxu0 %v970
        %v972 = vpop.f32.mrf.mxu0
        %v973 = vadd.f32 %v879, %v972
        %v974 = vand.u32 %v449, 4294901760
        %975 = vmatmul.f32.gmra.mxu0 %v974
        %v976 = vpop.f32.mrf.mxu0
        %v977 = vadd.f32 %v885, %v976
        %v978 = vand.u32 %v452, 4294901760
        %979 = vmatmul.f32.gmra.mxu0 %v978
        %v980 = vpop.f32.mrf.mxu0
        %v981 = vadd.f32 %v891, %v980
        %v982 = vand.u32 %v455, 4294901760
        %983 = vmatmul.f32.gmra.mxu0 %v982
        %v984 = vpop.f32.mrf.mxu0
        %v985 = vadd.f32 %v897, %v984
        %v986 = vand.u32 %v458, 4294901760
        %987 = vmatmul.f32.gmra.mxu0 %v986
        %v988 = vpop.f32.mrf.mxu0
        %v989 = vadd.f32 %v903, %v988
        %v990 = vand.u32 %v461, 4294901760
        %991 = vmatmul.f32.gmra.mxu0 %v990
        %v992 = vpop.f32.mrf.mxu0
        %v993 = vadd.f32 %v909, %v992
        %994 = vdwg.mxu0
        %995 = vmatpush.xpose.msra.mxu0 0.0
        %996 = vmatpush.xpose.msra.mxu0 0.0
        %997 = vmatpush.xpose.msra.mxu0 0.0
        %998 = vmatpush.xpose.msra.mxu0 0.0
        %999 = vmatpush.xpose.msra.mxu0 0.0
        %1000 = vmatpush.xpose.msra.mxu0 0.0
        %1001 = vmatpush.xpose.msra.mxu0 0.0
        %1002 = vmatpush.xpose.msra.mxu0 0.0
        %1003 = vmatpush.xpose.msra.mxu0 0.0
        %1004 = vmatpush.xpose.msra.mxu0 0.0
        %1005 = vmatpush.xpose.msra.mxu0 0.0
        %1006 = vmatpush.xpose.msra.mxu0 0.0
        %1007 = vmatpush.xpose.msra.mxu0 0.0
        %1008 = vmatpush.xpose.msra.mxu0 0.0
        %1009 = vmatpush.xpose.msra.mxu0 0.0
        %v1010 = vand.u32 %v464, 4294901760
        %1011 = vmatpush.xpose.msra.mxu0 %v1010
        %v1012 = vand.u32 %v416, 4294901760
        %1013 = vmatmul.f32.gmra.mxu0 %v1012
        %v1014 = vpop.f32.mrf.mxu0
        %v1015 = vadd.f32 %v933, %v1014
        %v1016 = vand.u32 %v419, 4294901760
        %1017 = vmatmul.f32.gmra.mxu0 %v1016
        %v1018 = vpop.f32.mrf.mxu0
        %v1019 = vadd.f32 %v937, %v1018
        %v1020 = vand.u32 %v422, 4294901760
        %1021 = vmatmul.f32.gmra.mxu0 %v1020
        %v1022 = vpop.f32.mrf.mxu0
        %v1023 = vadd.f32 %v941, %v1022
        %v1024 = vand.u32 %v425, 4294901760
        %1025 = vmatmul.f32.gmra.mxu0 %v1024
        %v1026 = vpop.f32.mrf.mxu0
        %v1027 = vadd.f32 %v945, %v1026
        %v1028 = vand.u32 %v428, 4294901760
        %1029 = vmatmul.f32.gmra.mxu0 %v1028
        %v1030 = vpop.f32.mrf.mxu0
        %v1031 = vadd.f32 %v949, %v1030
        %v1032 = vand.u32 %v431, 4294901760
        %1033 = vmatmul.f32.gmra.mxu0 %v1032
        %v1034 = vpop.f32.mrf.mxu0
        %v1035 = vadd.f32 %v953, %v1034
        %v1036 = vand.u32 %v434, 4294901760
        %1037 = vmatmul.f32.gmra.mxu0 %v1036
        %v1038 = vpop.f32.mrf.mxu0
        %v1039 = vadd.f32 %v957, %v1038
        %v1040 = vand.u32 %v437, 4294901760
        %1041 = vmatmul.f32.gmra.mxu0 %v1040
        %v1042 = vpop.f32.mrf.mxu0
        %v1043 = vadd.f32 %v961, %v1042
        %v1044 = vand.u32 %v440, 4294901760
        %1045 = vmatmul.f32.gmra.mxu0 %v1044
        %v1046 = vpop.f32.mrf.mxu0
        %v1047 = vadd.f32 %v965, %v1046
        %v1048 = vand.u32 %v443, 4294901760
        %1049 = vmatmul.f32.gmra.mxu0 %v1048
        %v1050 = vpop.f32.mrf.mxu0
        %v1051 = vadd.f32 %v969, %v1050
        %v1052 = vand.u32 %v446, 4294901760
        %1053 = vmatmul.f32.gmra.mxu0 %v1052
        %v1054 = vpop.f32.mrf.mxu0
        %v1055 = vadd.f32 %v973, %v1054
        %v1056 = vand.u32 %v449, 4294901760
        %1057 = vmatmul.f32.gmra.mxu0 %v1056
        %v1058 = vpop.f32.mrf.mxu0
        %v1059 = vadd.f32 %v977, %v1058
        %v1060 = vand.u32 %v452, 4294901760
        %1061 = vmatmul.f32.gmra.mxu0 %v1060
        %v1062 = vpop.f32.mrf.mxu0
        %v1063 = vadd.f32 %v981, %v1062
        %v1064 = vand.u32 %v455, 4294901760
        %1065 = vmatmul.f32.gmra.mxu0 %v1064
        %v1066 = vpop.f32.mrf.mxu0
        %v1067 = vadd.f32 %v985, %v1066
        %v1068 = vand.u32 %v458, 4294901760
        %1069 = vmatmul.f32.gmra.mxu0 %v1068
        %v1070 = vpop.f32.mrf.mxu0
        %v1071 = vadd.f32 %v989, %v1070
        %v1072 = vand.u32 %v461, 4294901760
        %1073 = vmatmul.f32.gmra.mxu0 %v1072
        %v1074 = vpop.f32.mrf.mxu0
        %v1075 = vadd.f32 %v993, %v1074
        %1076 = vdwg.mxu0
        %1077 = vxpose.xlu0.b32.start [1/16] %v1015, 128
        %1078 = vxpose.xlu0.b32.cont [2/16] %v1019, 128
        %1079 = vxpose.xlu0.b32.cont [3/16] %v1023, 128
        %1080 = vxpose.xlu0.b32.cont [4/16] %v1027, 128
        %1081 = vxpose.xlu0.b32.cont [5/16] %v1031, 128
        %1082 = vxpose.xlu0.b32.cont [6/16] %v1035, 128
        %1083 = vxpose.xlu0.b32.cont [7/16] %v1039, 128
        %1084 = vxpose.xlu0.b32.cont [8/16] %v1043, 128
        %1085 = vxpose.xlu0.b32.cont [9/16] %v1047, 128
        %1086 = vxpose.xlu0.b32.cont [10/16] %v1051, 128
        %1087 = vxpose.xlu0.b32.cont [11/16] %v1055, 128
        %1088 = vxpose.xlu0.b32.cont [12/16] %v1059, 128
        %1089 = vxpose.xlu0.b32.cont [13/16] %v1063, 128
        %1090 = vxpose.xlu0.b32.cont [14/16] %v1067, 128
        %1091 = vxpose.xlu0.b32.cont [15/16] %v1071, 128
        %1092 = vxpose.xlu0.b32.end [16/16] %v1075, 128
        %v1093 = vpop.trf.xlu0
        %v1094 = vpop.trf.xlu0
        %v1095 = vpop.trf.xlu0
        %v1096 = vpop.trf.xlu0
        %v1097 = vpop.trf.xlu0
        %v1098 = vpop.trf.xlu0
        %v1099 = vpop.trf.xlu0
        %v1100 = vpop.trf.xlu0
        %v1101 = vpop.trf.xlu0
        %v1102 = vpop.trf.xlu0
        %v1103 = vpop.trf.xlu0
        %v1104 = vpop.trf.xlu0
        %v1105 = vpop.trf.xlu0
        %v1106 = vpop.trf.xlu0
        %v1107 = vpop.trf.xlu0
        %v1108 = vpop.trf.xlu0
        %v1109 = vld [vmem:[%s3] sm:$0xff]
        %1111 = vset.pattern.permute.xlu0 0
        %1112 = vperm.xlu0 %1111, %v1109
        %v1113 = vpop.permute.xlu0 %1112
        %v1116 = vperm.slane %v360, 0
        %v1118 = vmul.f32 %v1113, %v1116
        %v1119 = vld [vmem:[%s2] sm:$0xff]
        %1121 = vset.pattern.permute.xlu0 0
        %1122 = vperm.xlu0 %1121, %v1119
        %v1123 = vpop.permute.xlu0 %1122
        %v1125 = vadd.f32 %v1118, %v1123
        %v1126 = vadd.f32 %v359, 1e-10
        %v1127 = vrcp.pop %v1126
        %v1128 = vmul.f32 %v1126, %v1127
        %v1129 = vsub.f32 1.0, %v1128
        %v1130 = vmul.f32 %v1127, %v1129
        %v1131 = vadd.f32 %v1127, %v1130
        %vm1132 = vweird.f32 %v1126
        %vm1133 = vweird.f32 %v1127
        %vm1134 = vmor %vm1132, %vm1133
        %v1135 = vsel %vm1134, %v1127, %v1131
        %v1136 = vand.u32 2147483647, %v1126
        %vm1137 = vcmp.eq.f32.partialorder %v1136, 8.507059e+37
        %v1138 = vand.u32 %v1126, 2147483648
        %v1139 = vor.u32 1.1754944e-38, %v1138
        %v1140 = vsel %vm1137, %v1139, %v1135
        %v1141 = vmul.f32 %v358, %v1140
        %v1142 = vmul.f32 %v360, %v1141
        %v1143 = vsub.f32 %v333, %v1142
        %v1144 = vadd.f32 %v1093, %v1125
        %v1145 = vperm.slane %v1141, 0
        %v1146 = vmul.f32 %v1144, %v1145
        %v1147 = vperm.slane %v1143, 0
        %v1148 = vadd.f32 %v1146, %v1147
        %1149 = vst [vmem:[%s310] sm:$0xff] %v1148
        %s1150 = sand.u32 %s188, 1
        %s1151 = scalar_lea.sflag [#allocation4], %s1150
        %s1152 = sand.u32 %s188, 1
        %s1153 = smul.addr %s1152, 8
        %s1154 = scalar_lea.vmem [#allocation5], %s1153
        // Predicated region
        $region49: #{tpu_custom_call.1} parent=43 // pred_check
          %p1155 = pneg %p198
        $region50: #{tpu_custom_call.1} parent=43 // pred_check_branch
          %1157 = sbr.rel (%p1155) target = $region52
        $region51: #{tpu_custom_call.1} parent=43 // pred_region
          %1159 = vsyncadd %s1151, 0
          %s1160 = sadd.s32 %s28, %s27
          %s1161 = smul.addr %s1160, 8
          %s1162 = scalar_lea.hbm %s6, %s1161
          %s1164 = sshll.u32 %s1154, 4
          %s1165 = int_to_ptr.vmem [resolvable:$true] %s1164
          %s1166 = sshll.u32 %s1162, 4
          %s1167 = int_to_ptr.hbm [resolvable:$true] %s1166
          %1169 = dma.vmem_to_hbm [thread:$0]  %s1165, 128, %s1167, %s1151
        $region52: #{tpu_custom_call.1} parent=43 // pred_fallthru
          _
      $region44: #{tpu_custom_call.1} parent=5 // pred_fallthru
        _
      %p1170 = scmp.le.s32.totalorder 2, %s18
      // Predicated region
      $region53: #{tpu_custom_call.1} parent=5 // pred_check
        %p1171 = pneg %p1170
      $region54: #{tpu_custom_call.1} parent=5 // pred_check_branch
        %1173 = sbr.rel (%p1171) target = $region56
      $region55: #{tpu_custom_call.1} parent=5 // pred_region
        %s1174 = ssub.s32 %s18, 2
        // Predicated region
        $region57: #{tpu_custom_call.1} parent=55 // pred_check
          %p1175 = pneg %p204
        $region58: #{tpu_custom_call.1} parent=55 // pred_check_branch
          %1177 = sbr.rel (%p1175) target = $region60
        $region59: #{tpu_custom_call.1} parent=55 // pred_region
          %s1178 = sand.u32 %s189, 1
          %s1179 = scalar_lea.sflag [#allocation4], %s1178
          %s1180 = sand.u32 %s189, 1
          %s1181 = smul.addr %s1180, 8
          %s1182 = scalar_lea.vmem [#allocation5], %s1181
          %1184 = dma.done %s1179, 128
        $region60: #{tpu_custom_call.1} parent=55 // pred_fallthru
          _
      $region56: #{tpu_custom_call.1} parent=5 // pred_fallthru
        _
    $region6: #{tpu_custom_call.1} parent=1 // loop_footer
      %s22 = sadd.s32 1, %s18
    $region7: #{tpu_custom_call.1} parent=1 // loop_footer_branch
      %17 = sbr.rel target = $region3
    $region8: #{tpu_custom_call.1} parent=1 // loop_exit
      _
    %1185 = vsyncpa [#allocation3], 1
    %s1186 = scalar_lea.sflag [#allocation3], 1
    %1187 = vsyncpa %s1186, 1
    %1188 = vsyncpa [#allocation4], 1
    %s1189 = scalar_lea.sflag [#allocation4], 1
    %1190 = vsyncpa %s1189, 1

</llo_original>
